<compile_context>
chip_gen: v6e
topology: v6e:2x2x1
jax: 0.10.0
libtpu: 0.0.40
codegen_flags: <defaults>
</compile_context>

<pallas_src>
import functools

import jax
import jax.numpy as jnp
from jax import lax
from jax.experimental import pallas as pl
from jax.experimental.pallas import tpu as pltpu


def _round_up(x: int, m: int) -> int:
    return (x + m - 1) // m * m


def _center_loss_kernel(labels_ref, feat_ref, centers_ref, out_ref, *, scale):
    """Accumulate ||feat[i] - centers[labels[i]]||^2 over batch tiles.

    labels_ref:  VMEM (TB, 1)   int32   (padded rows hold -1)
    feat_ref:    VMEM (TB, Dp)  float32 (zero padded)
    centers_ref: VMEM (Cp, Dp)  float32 (zero padded, resident over grid)
    out_ref:     VMEM (1, 1)    float32 (resident accumulator; scaled at end)
    """
    step = pl.program_id(0)

    @pl.when(step == 0)
    def _init():
        out_ref[...] = jnp.zeros_like(out_ref)

    tb = feat_ref.shape[0]
    c_pad = centers_ref.shape[0]

    lbl = labels_ref[...]                                         # (TB, 1)
    class_ids = lax.broadcasted_iota(jnp.int32, (tb, c_pad), 1)   # (TB, Cp)
    onehot = (lbl == class_ids).astype(jnp.float32)               # exact 0/1

    # Vectorized gather: centers[labels] == onehot @ centers, on the MXU.
    gathered = jnp.dot(onehot, centers_ref[...],
                       preferred_element_type=jnp.float32)        # (TB, Dp)

    d = feat_ref[...] - gathered
    # Padded rows/lanes contribute exactly zero (feat = 0, selected center = 0).
    out_ref[...] += jnp.sum(d * d)

    @pl.when(step == pl.num_programs(0) - 1)
    def _finalize():
        out_ref[...] *= scale


def center_loss(feat, labels, centers, *, block_b: int = 1024,
                vmem_budget_bytes: int = 20 * 1024 * 1024):
    """loss = sum_i ||feat[i] - centers[labels[i]]||^2 / B / 2  (f32 scalar)."""
    B, D = feat.shape
    C, Dc = centers.shape
    assert Dc == D, "feature dims of feat and centers must match"

    d_pad = _round_up(max(D, 1), 128)          # lane-dense feature dim
    c_pad = _round_up(max(C, 1), 128)          # MXU-friendly contraction dim

    # Adaptive batch tile: feat double-buffer + in-kernel temporaries must fit
    # the VMEM budget (centers are resident and assumed to fit alongside).
    # TODO(synk): tile the class/feature dims for very large centers matrices.
    per_row_bytes = 4 * (5 * d_pad + c_pad + 2)
    tb_cap = max(8, (vmem_budget_bytes // per_row_bytes) // 8 * 8)
    tb = min(_round_up(B, 8), _round_up(block_b, 8), tb_cap)
    b_pad = _round_up(B, tb)
    num_tiles = b_pad // tb

    feat32 = feat.astype(jnp.float32)
    if (b_pad, d_pad) != (B, D):
        feat_p = jnp.zeros((b_pad, d_pad), jnp.float32).at[:B, :D].set(feat32)
    else:
        feat_p = feat32

    centers32 = centers.astype(jnp.float32)
    if (c_pad, d_pad) != (C, D):
        centers_p = jnp.zeros((c_pad, d_pad), jnp.float32).at[:C, :D].set(
            centers32)
    else:
        centers_p = centers32

    labels32 = labels.astype(jnp.int32)
    if b_pad != B:
        # Padded rows get label -1 -> all-zero one-hot -> zero contribution.
        labels_p = jnp.full((b_pad,), -1, dtype=jnp.int32).at[:B].set(labels32)
    else:
        labels_p = labels32
    labels_p = labels_p.reshape(b_pad, 1)

    cost = pl.CostEstimate(
        flops=2 * b_pad * c_pad * d_pad + 3 * b_pad * d_pad,
        transcendentals=0,
        bytes_accessed=(b_pad * d_pad + c_pad * d_pad + b_pad + 1) * 4,
    )

    kernel = functools.partial(_center_loss_kernel,
                               scale=float(1.0 / (2.0 * B)))

    out = pl.pallas_call(
        kernel,
        out_shape=jax.ShapeDtypeStruct((1, 1), jnp.float32),
        grid_spec=pltpu.PrefetchScalarGridSpec(
            num_scalar_prefetch=0,
            grid=(num_tiles,),
            in_specs=[
                pl.BlockSpec((tb, 1), lambda i: (i, 0)),         # labels tile
                pl.BlockSpec((tb, d_pad), lambda i: (i, 0)),     # feat tile
                pl.BlockSpec((c_pad, d_pad), lambda i: (0, 0)),  # centers (resident)
            ],
            out_specs=pl.BlockSpec((1, 1), lambda i: (0, 0)),    # scalar accum
        ),
        compiler_params=pltpu.CompilerParams(
            # Output block is accumulated across the batch axis, so it must be
            # sequential ("arbitrary"); DMA of feat tiles is still pipelined.
            dimension_semantics=("arbitrary",),
        ),
        cost_estimate=cost,
    )(labels_p, feat_p, centers_p)

    return out[0, 0]


if __name__ == "__main__":
    # Small deterministic example consistent with the module's forward.
    batch_size = 4
    num_classes = 8
    feature_dim = 32

    key = jax.random.PRNGKey(0)
    k_feat, k_centers, k_labels = jax.random.split(key, 3)

    feat = jax.random.normal(k_feat, (batch_size, feature_dim),
                             dtype=jnp.float32)
    # Deterministic analogue of nn.Parameter(torch.randn(C, D)).
    centers = jax.random.normal(k_centers, (num_classes, feature_dim),
                                dtype=jnp.float32)
    labels = jax.random.randint(k_labels, (batch_size,), 0, num_classes,
                                dtype=jnp.int32)

    loss = center_loss(feat, labels, centers)
    jax.block_until_ready(loss)

    ref = jnp.sum((feat - centers[labels]) ** 2) / batch_size / 2.0
    assert jnp.allclose(loss, ref, rtol=1e-5, atol=1e-5), (loss, ref)

    # Multi-tile / padded path (grid > 1; B, C, D all unaligned).
    b2, c2, d2 = 20, 10, 40
    k1, k2, k3 = jax.random.split(jax.random.PRNGKey(1), 3)
    feat2 = jax.random.normal(k1, (b2, d2), dtype=jnp.float32)
    centers2 = jax.random.normal(k2, (c2, d2), dtype=jnp.float32)
    labels2 = jax.random.randint(k3, (b2,), 0, c2, dtype=jnp.int32)
    loss2 = center_loss(feat2, labels2, centers2, block_b=8)
    jax.block_until_ready(loss2)
    ref2 = jnp.sum((feat2 - centers2[labels2]) ** 2) / b2 / 2.0
    assert jnp.allclose(loss2, ref2, rtol=1e-5, atol=1e-5), (loss2, ref2)

    print("KERNEL_OK")
</pallas_src>

<mosaic_0001>
module attributes {stable_mosaic.version = 11 : i64} {
  func.func @_center_loss_kernel(%arg0: i32, %arg1: memref<8x1xi32, #tpu.memory_space<vmem>>, %arg2: memref<8x128xf32, #tpu.memory_space<vmem>>, %arg3: memref<128x128xf32, #tpu.memory_space<vmem>>, %arg4: memref<1x1xf32, #tpu.memory_space<vmem>>) attributes {dimension_semantics = [#tpu.dimension_semantics<arbitrary>], iteration_bounds = array<i64: 1>, scalar_prefetch = 0 : i64, scratch_operands = 0 : i64, tpu.core_type = #tpu.core_type<tc>, window_params = [{transform_indices = @transform_0, window_bounds = array<i64: 8, 1>}, {transform_indices = @transform_1, window_bounds = array<i64: 8, 128>}, {pipeline_mode = #tpu.pipeline_mode<synchronous>, transform_indices = @transform_2, window_bounds = array<i64: 128, 128>}, {pipeline_mode = #tpu.pipeline_mode<synchronous>, transform_indices = @transform_3, window_bounds = array<i64: 1, 1>}]} {
    %c0_i32 = arith.constant 0 : i32
    %0 = arith.cmpi eq, %arg0, %c0_i32 : i32
    %1 = arith.extui %0 : i1 to i32
    %c0_i32_0 = arith.constant 0 : i32
    %2 = arith.cmpi ne, %1, %c0_i32_0 : i32
    scf.if %2 {
      %cst_13 = arith.constant 0.000000e+00 : f32
      %25 = vector.broadcast %cst_13 : f32 to vector<1x1xf32>
      %c0_14 = arith.constant 0 : index
      %c0_15 = arith.constant 0 : index
      %26 = vector.load %arg4[%c0_14, %c0_15] : memref<1x1xf32, #tpu.memory_space<vmem>>, vector<1x1xf32>
      tpu.vector_store %arg4[%c0_14, %c0_15], %25 {strides = array<i32>} : memref<1x1xf32, #tpu.memory_space<vmem>>, vector<1x1xf32>,
    } else {
    }
    %c0 = arith.constant 0 : index
    %c0_1 = arith.constant 0 : index
    %3 = vector.load %arg1[%c0, %c0_1] : memref<8x1xi32, #tpu.memory_space<vmem>>, vector<8x1xi32>
    %4 = tpu.iota {dimensions = array<i32: 1>} : vector<8x128xi32>
    %5 = vector.broadcast %3 : vector<8x1xi32> to vector<8x128xi32>
    %6 = arith.cmpi eq, %5, %4 : vector<8x128xi32>
    %7 = arith.extui %6 : vector<8x128xi1> to vector<8x128xi32>
    %8 = arith.sitofp %7 : vector<8x128xi32> to vector<8x128xf32>
    %c0_2 = arith.constant 0 : index
    %c0_3 = arith.constant 0 : index
    %9 = vector.load %arg3[%c0_2, %c0_3] : memref<128x128xf32, #tpu.memory_space<vmem>>, vector<128x128xf32>
    %cst = arith.constant dense<0.000000e+00> : vector<8x128xf32>
    %10 = tpu.matmul %8, %9, %cst {dimension_numbers = #tpu.dot_dimension_numbers<[1], [0], [0], [1], [0, 0, 1, 1], [], []>} : vector<8x128xf32>, vector<128x128xf32>, vector<8x128xf32> -> vector<8x128xf32>
    %c0_4 = arith.constant 0 : index
    %c0_5 = arith.constant 0 : index
    %11 = vector.load %arg2[%c0_4, %c0_5] : memref<8x128xf32, #tpu.memory_space<vmem>>, vector<8x128xf32>
    %12 = arith.subf %11, %10 : vector<8x128xf32>
    %c0_6 = arith.constant 0 : index
    %c0_7 = arith.constant 0 : index
    %13 = vector.load %arg4[%c0_6, %c0_7] : memref<1x1xf32, #tpu.memory_space<vmem>>, vector<1x1xf32>
    %14 = arith.mulf %12, %12 : vector<8x128xf32>
    %15 = vector.shape_cast %14 : vector<8x128xf32> to vector<1x8x128xf32>
    %cst_8 = arith.constant dense<0.000000e+00> : vector<1xf32>
    %16 = vector.multi_reduction <add>, %15, %cst_8 [1, 2] : vector<1x8x128xf32> to vector<1xf32>
    %17 = vector.shape_cast %16 : vector<1xf32> to vector<1x1x1xf32>
    %18 = vector.extract %17[0, 0, 0] : f32 from vector<1x1x1xf32>
    %19 = vector.broadcast %18 : f32 to vector<1x1xf32>
    %20 = arith.addf %13, %19 : vector<1x1xf32>
    %c0_9 = arith.constant 0 : index
    %c0_10 = arith.constant 0 : index
    %21 = vector.load %arg4[%c0_9, %c0_10] : memref<1x1xf32, #tpu.memory_space<vmem>>, vector<1x1xf32>
    tpu.vector_store %arg4[%c0_9, %c0_10], %20 {strides = array<i32>} : memref<1x1xf32, #tpu.memory_space<vmem>>, vector<1x1xf32>,
    %c0_i32_11 = arith.constant 0 : i32
    %22 = arith.cmpi eq, %arg0, %c0_i32_11 : i32
    %23 = arith.extui %22 : i1 to i32
    %c0_i32_12 = arith.constant 0 : i32
    %24 = arith.cmpi ne, %23, %c0_i32_12 : i32
    scf.if %24 {
      %c0_13 = arith.constant 0 : index
      %c0_14 = arith.constant 0 : index
      %25 = vector.load %arg4[%c0_13, %c0_14] : memref<1x1xf32, #tpu.memory_space<vmem>>, vector<1x1xf32>
      %cst_15 = arith.constant 1.250000e-01 : f32
      %26 = vector.broadcast %cst_15 : f32 to vector<1x1xf32>
      %27 = arith.mulf %25, %26 : vector<1x1xf32>
      %c0_16 = arith.constant 0 : index
      %c0_17 = arith.constant 0 : index
      %28 = vector.load %arg4[%c0_16, %c0_17] : memref<1x1xf32, #tpu.memory_space<vmem>>, vector<1x1xf32>
      tpu.vector_store %arg4[%c0_16, %c0_17], %27 {strides = array<i32>} : memref<1x1xf32, #tpu.memory_space<vmem>>, vector<1x1xf32>,
    } else {
    }
    return
  }
  func.func @transform_0(%arg0: i32) -> (i32, i32) {
    %c0_i32 = arith.constant 0 : i32
    %c0_i32_0 = arith.constant 0 : i32
    return %arg0, %c0_i32 : i32, i32
  }
  func.func @transform_1(%arg0: i32) -> (i32, i32) {
    %c0_i32 = arith.constant 0 : i32
    %c0_i32_0 = arith.constant 0 : i32
    return %arg0, %c0_i32 : i32, i32
  }
  func.func @transform_2(%arg0: i32) -> (i32, i32) {
    %c0_i32 = arith.constant 0 : i32
    %c0_i32_0 = arith.constant 0 : i32
    %c0_i32_1 = arith.constant 0 : i32
    return %c0_i32, %c0_i32_0 : i32, i32
  }
  func.func @transform_3(%arg0: i32) -> (i32, i32) {
    %c0_i32 = arith.constant 0 : i32
    %c0_i32_0 = arith.constant 0 : i32
    %c0_i32_1 = arith.constant 0 : i32
    return %c0_i32, %c0_i32_0 : i32, i32
  }
}

</mosaic_0001>

<llo_original>
// kernel: tpu_custom_call.1
$region0: #{tpu_custom_call.1}
  #allocation0 [shape = 'u32[]', space=smem, size = 0x4, offset = 0x4, fixed_abs, tag = 'smem constant byte address 0x4 - core index']
  #allocation1 [shape = 'u32[144,128]{1,0:T(1,128)}', space=vmem, size = 0x12000, scoped, tag = 'internal scratch']
  %s0 = inlined_call_operand.vmem [shape: s32[8,1], index: 0, kind: input, shape index: {}]
  %s1 = inlined_call_operand.vmem [shape: f32[8,128], index: 1, kind: input, shape index: {}]
  %s2 = inlined_call_operand.hbm [shape: f32[128,128], index: 2, kind: input, shape index: {}]
  %s3 = inlined_call_operand.hbm [shape: f32[1,1], index: 3, kind: output, shape index: {}]
  %s4 = sld [smem:[#allocation0]]
  $region34: #{tpu_custom_call.1} parent=0
    _
  %s6 = ssub.s32 1, %s4
  %s7 = scalar_select 0, %s6, %s4
  $region1: #{tpu_custom_call.1} parent=0
    #allocation2 [shape = 'u8[65536]{0}', space=vmem, size = 0x10000, scoped, tag = 'input window, operand 2, single buffered']
    #allocation3 [shape = 's32[1]{0}', space=sflag, size = 0x4, scoped, tag = 'scoped memory for tpu_custom_call.1']
    #allocation4 [shape = 's32[1]{0}', space=sflag, size = 0x4, scoped, tag = 'scoped memory for tpu_custom_call.1']
    #allocation5 [shape = 'u8[512]{0}', space=vmem, size = 0x400, scoped, tag = 'output window, operand 0, single buffered']
    %8 = vsyncpa [#allocation3], 0
    %9 = vsyncpa [#allocation4], 0
    // Predicated region
    $region2: #{tpu_custom_call.1} parent=1 // pred_check
      _
    $region3: #{tpu_custom_call.1} parent=1 // pred_check_branch
      %11 = sbr.rel (0) target = $region5
    $region4: #{tpu_custom_call.1} parent=1 // pred_region
      _
    $region5: #{tpu_custom_call.1} parent=1 // pred_fallthru
      _
    // Predicated region
    $region6: #{tpu_custom_call.1} parent=1 // pred_check
      _
    $region7: #{tpu_custom_call.1} parent=1 // pred_check_branch
      %13 = sbr.rel (0) target = $region9
    $region8: #{tpu_custom_call.1} parent=1 // pred_region
      _
    $region9: #{tpu_custom_call.1} parent=1 // pred_fallthru
      _
    // Predicated region
    $region10: #{tpu_custom_call.1} parent=1 // pred_check
      _
    $region11: #{tpu_custom_call.1} parent=1 // pred_check_branch
      %15 = sbr.rel (0) target = $region13
    $region12: #{tpu_custom_call.1} parent=1 // pred_region
      %s17 = ssub.s32 2048, 2048
      %18 = vsyncadd [#allocation3], %s17
      %s19 = sshll.u32 [#allocation2], 4
      %s20 = int_to_ptr.vmem [resolvable:$true] %s19
      %25 = dma.hbm_to_vmem [thread:$0]  %s2, 2048, %s20, [#allocation3], 128, 128, 8
    $region13: #{tpu_custom_call.1} parent=1 // pred_fallthru
      _
    // Predicated region
    $region14: #{tpu_custom_call.1} parent=1 // pred_check
      _
    $region15: #{tpu_custom_call.1} parent=1 // pred_check_branch
      %27 = sbr.rel (0) target = $region17
    $region16: #{tpu_custom_call.1} parent=1 // pred_region
      %28 = dma.done [#allocation3], 2048
    $region17: #{tpu_custom_call.1} parent=1 // pred_fallthru
      _
    %p29 = scmp.eq.s32.totalorder 0, 0
    // Predicated region
    $region18: #{tpu_custom_call.1} parent=1 // pred_check
      %p30 = pneg %p29
    $region19: #{tpu_custom_call.1} parent=1 // pred_check_branch
      %32 = sbr.rel (%p30) target = $region21
    $region20: #{tpu_custom_call.1} parent=1 // pred_region
      %vm33 = vcmask 0
      %34 = vst.msk [vmem:[#allocation5] sm:$0x1] %vm33, 0.0
    $region21: #{tpu_custom_call.1} parent=1 // pred_fallthru
      _
    %v35 = vld [vmem:[%s0] sm:$0xff]
    %v36 = vlaneseq
    %v37 = vand.u32 %v36, 127
    %38 = vset.pattern.permute.xlu0 0
    %39 = vperm.xlu0 %38, %v35
    %v40 = vpop.permute.xlu0 %39
    %vm41 = vcmp.eq.s32.totalorder %v40, %v37
    %v42 = vsel %vm41, 1, 0
    %v43 = vcvt.s32.f32 %v42
    %v44 = vld [vmem:[#allocation2] sm:$0xff]
    %v45 = vld [vmem:[#allocation2 + $0x8] sm:$0xff]
    %v46 = vld [vmem:[#allocation2 + $0x10] sm:$0xff]
    %v47 = vld [vmem:[#allocation2 + $0x18] sm:$0xff]
    %v48 = vld [vmem:[#allocation2 + $0x20] sm:$0xff]
    %v49 = vld [vmem:[#allocation2 + $0x28] sm:$0xff]
    %v50 = vld [vmem:[#allocation2 + $0x30] sm:$0xff]
    %v51 = vld [vmem:[#allocation2 + $0x38] sm:$0xff]
    %v52 = vld [vmem:[#allocation2 + $0x40] sm:$0xff]
    %v53 = vld [vmem:[#allocation2 + $0x48] sm:$0xff]
    %v54 = vld [vmem:[#allocation2 + $0x50] sm:$0xff]
    %v55 = vld [vmem:[#allocation2 + $0x58] sm:$0xff]
    %v56 = vld [vmem:[#allocation2 + $0x60] sm:$0xff]
    %v57 = vld [vmem:[#allocation2 + $0x68] sm:$0xff]
    %v58 = vld [vmem:[#allocation2 + $0x70] sm:$0xff]
    %v59 = vld [vmem:[#allocation2 + $0x78] sm:$0xff]
    %60 = vmatprep.subr.mxu0 0.0
    %61 = vmatpush1.msra.mxu0 %v59
    %62 = vmatprep.subr.mxu0 0.0
    %63 = vmatpush1.msra.mxu0 %v58
    %64 = vmatprep.subr.mxu0 0.0
    %65 = vmatpush1.msra.mxu0 %v57
    %66 = vmatprep.subr.mxu0 0.0
    %67 = vmatpush1.msra.mxu0 %v56
    %68 = vmatprep.subr.mxu0 0.0
    %69 = vmatpush1.msra.mxu0 %v55
    %70 = vmatprep.subr.mxu0 0.0
    %71 = vmatpush1.msra.mxu0 %v54
    %72 = vmatprep.subr.mxu0 0.0
    %73 = vmatpush1.msra.mxu0 %v53
    %74 = vmatprep.subr.mxu0 0.0
    %75 = vmatpush1.msra.mxu0 %v52
    %76 = vmatprep.subr.mxu0 0.0
    %77 = vmatpush1.msra.mxu0 %v51
    %78 = vmatprep.subr.mxu0 0.0
    %79 = vmatpush1.msra.mxu0 %v50
    %80 = vmatprep.subr.mxu0 0.0
    %81 = vmatpush1.msra.mxu0 %v49
    %82 = vmatprep.subr.mxu0 0.0
    %83 = vmatpush1.msra.mxu0 %v48
    %84 = vmatprep.subr.mxu0 0.0
    %85 = vmatpush1.msra.mxu0 %v47
    %86 = vmatprep.subr.mxu0 0.0
    %87 = vmatpush1.msra.mxu0 %v46
    %88 = vmatprep.subr.mxu0 0.0
    %89 = vmatpush1.msra.mxu0 %v45
    %90 = vmatprep.subr.mxu0 0.0
    %91 = vmatpush1.msra.mxu0 %v44
    %92 = vmatprep.subr.mxu0 0.0
    %93 = vmatpush2.msra.mxu0 0.0
    %94 = vmatprep.subr.mxu0 0.0
    %95 = vmatpush2.msra.mxu0 0.0
    %96 = vmatprep.subr.mxu0 0.0
    %97 = vmatpush2.msra.mxu0 0.0
    %98 = vmatprep.subr.mxu0 0.0
    %99 = vmatpush2.msra.mxu0 0.0
    %100 = vmatprep.subr.mxu0 0.0
    %101 = vmatpush2.msra.mxu0 0.0
    %102 = vmatprep.subr.mxu0 0.0
    %103 = vmatpush2.msra.mxu0 0.0
    %104 = vmatprep.subr.mxu0 0.0
    %105 = vmatpush2.msra.mxu0 0.0
    %106 = vmatprep.subr.mxu0 0.0
    %107 = vmatpush2.msra.mxu0 0.0
    %108 = vmatprep.subr.mxu0 0.0
    %109 = vmatpush2.msra.mxu0 0.0
    %110 = vmatprep.subr.mxu0 0.0
    %111 = vmatpush2.msra.mxu0 0.0
    %112 = vmatprep.subr.mxu0 0.0
    %113 = vmatpush2.msra.mxu0 0.0
    %114 = vmatprep.subr.mxu0 0.0
    %115 = vmatpush2.msra.mxu0 0.0
    %116 = vmatprep.subr.mxu0 0.0
    %117 = vmatpush2.msra.mxu0 0.0
    %118 = vmatprep.subr.mxu0 0.0
    %119 = vmatpush2.msra.mxu0 0.0
    %120 = vmatprep.subr.mxu0 0.0
    %121 = vmatpush2.msra.mxu0 0.0
    %122 = vmatprep.subr.mxu0 0.0
    %123 = vmatpush2.msra.mxu0 0.0
    %124 = vmatprep.mubr.f32.mxu0 0.0
    %125 = vmatmul.mubr.f32.gmra.mxu0 %v43
    %v126 = vpop.f32.mrf.mxu0
    %v127 = vadd.f32 0.0, %v126
    %v128 = vpop.f32.mrf.mxu0
    %129 = vdwg.mxu0
    %v130 = vld [vmem:[%s1] sm:$0xff]
    %v131 = vsub.f32 %v130, %v127
    %v132 = vld [vmem:[#allocation5] sm:$0x1]
    %v133 = vmul.f32 %v131, %v131
    %134 = vadd.xlane.f32.xlu0 %v133
    %v135 = vpop.xlane.xlu0 %134
    %v136 = vrot.slane %v135, 4
    %v137 = vadd.f32 %v135, %v136
    %v138 = vrot.slane %v137, 2
    %v139 = vadd.f32 %v137, %v138
    %v140 = vrot.slane %v139, 1
    %v141 = vadd.f32 %v139, %v140
    %s142 = vtos %v141
    %v143 = vstv %s142
    %v144 = vadd.f32 %v132, %v143
    %vm145 = vcmask 0
    %146 = vst.msk [vmem:[#allocation5] sm:$0x1] %vm145, %v144
    // Predicated region
    $region22: #{tpu_custom_call.1} parent=1 // pred_check
      %p147 = pneg %p29
    $region23: #{tpu_custom_call.1} parent=1 // pred_check_branch
      %149 = sbr.rel (%p147) target = $region25
    $region24: #{tpu_custom_call.1} parent=1 // pred_region
      %v150 = vld [vmem:[#allocation5] sm:$0x1]
      %v151 = vmul.f32 %v150, 0.125
      %152 = vst.msk [vmem:[#allocation5] sm:$0x1] %vm145, %v151
    $region25: #{tpu_custom_call.1} parent=1 // pred_fallthru
      _
    // Predicated region
    $region26: #{tpu_custom_call.1} parent=1 // pred_check
      _
    $region27: #{tpu_custom_call.1} parent=1 // pred_check_branch
      %154 = sbr.rel (0) target = $region29
    $region28: #{tpu_custom_call.1} parent=1 // pred_region
      %s156 = ssub.s32 16, 16
      %157 = vsyncadd [#allocation4], %s156
      %s159 = sshll.u32 [#allocation5], 4
      %s160 = int_to_ptr.vmem [resolvable:$true] %s159
      %162 = dma.vmem_to_hbm [thread:$0]  %s160, 16, %s3, [#allocation4]
    $region29: #{tpu_custom_call.1} parent=1 // pred_fallthru
      _
    // Predicated region
    $region30: #{tpu_custom_call.1} parent=1 // pred_check
      _
    $region31: #{tpu_custom_call.1} parent=1 // pred_check_branch
      %164 = sbr.rel (0) target = $region33
    $region32: #{tpu_custom_call.1} parent=1 // pred_region
      %165 = dma.done [#allocation4], 16
    $region33: #{tpu_custom_call.1} parent=1 // pred_fallthru
      _
    %166 = vsyncpa [#allocation3], 1
    %167 = vsyncpa [#allocation4], 1

</llo_original>
